<compile_context>
chip_gen: v7x
topology: tpu7x:2x2x1
jax: 0.10.0
libtpu: 0.0.40
codegen_flags: <defaults>
</compile_context>

<pallas_src>
import functools
import math

import jax
import jax.numpy as jnp
from jax.experimental import pallas as pl
from jax.experimental.pallas import tpu as pltpu

MIN_S = 1e-7


def _lsq_kernel(s_ref, x_ref, o_ref, *, thd_neg, thd_pos):
    # s_ref: (1,) f32 scalar in SMEM; x_ref / o_ref: (block_rows, W) VMEM tiles.
    s = jnp.maximum(s_ref[0], MIN_S)
    inv = 1.0 / s                               # scalar reciprocal, once per step
    x = x_ref[...].astype(jnp.float32) * inv    # == x / s up to 1 ULP pre-round
    x = jnp.clip(x, thd_neg, thd_pos)
    o_ref[...] = (jnp.round(x) * s).astype(o_ref.dtype)


def lsq_act_quantize(x, s, *, thd_neg, thd_pos, block_elems=256 * 1024):
    """LSQ fake-quant forward. x: any shape / float dtype, s: scalar scale."""
    orig_shape = x.shape
    orig_dtype = x.dtype
    flat = x.reshape(-1)          # free bitcast; dtype stays native (no upcast)
    n = flat.shape[0]

    s_arr = jnp.reshape(s, (1,)).astype(jnp.float32)

    # ---- lane-dense 2-D layout: (rows, W), W a wide multiple of 128 ---------
    if n % 512 == 0:
        W = 512
    elif n % 256 == 0:
        W = 256
    else:
        W = 128

    # ---- block shape: ~block_elems elements per tile (1 MiB for f32) --------
    max_rows = max(8, (block_elems // W) // 8 * 8)     # multiple of 8 sublanes
    rows_unpadded = pl.cdiv(n, W)
    if rows_unpadded <= max_rows:
        block_rows = rows_unpadded                     # single step, full-dim block
    else:
        block_rows = max_rows
    grid = pl.cdiv(rows_unpadded, block_rows)
    rows = grid * block_rows
    n_padded = rows * W

    if n_padded != n:
        # Only taken for awkward sizes (numel not a multiple of the tile);
        # typical conv / transformer activation sizes hit the pad-free path.
        flat = jnp.pad(flat, (0, n_padded - n))
    x2d = flat.reshape(rows, W)

    kernel = functools.partial(
        _lsq_kernel, thd_neg=float(thd_neg), thd_pos=float(thd_pos))

    out2d = pl.pallas_call(
        kernel,
        out_shape=jax.ShapeDtypeStruct((rows, W), orig_dtype),
        grid_spec=pltpu.PrefetchScalarGridSpec(
            num_scalar_prefetch=0,
            grid=(grid,),
            in_specs=[
                pl.BlockSpec(memory_space=pltpu.MemorySpace.SMEM),   # scalar s
                pl.BlockSpec((block_rows, W), lambda i: (i, 0)),
            ],
            out_specs=pl.BlockSpec((block_rows, W), lambda i: (i, 0)),
        ),
        compiler_params=pltpu.CompilerParams(
            dimension_semantics=("parallel",),        # shards across v7x's 2 TCs
            vmem_limit_bytes=32 * 1024 * 1024,        # ample; usage is ~4 MiB
        ),
    )(s_arr, x2d)

    out = out2d.reshape(-1)
    if n_padded != n:
        out = out[:n]
    return out.reshape(orig_shape)


def lsq_act_quantize_ref(x, s, *, thd_neg, thd_pos):
    # Mirrors the kernel math (x * (1/s)); differs from torch's literal x / s
    # by at most 1 ULP in the pre-round value (only matters at exact .5 ties).
    s = jnp.maximum(s.astype(jnp.float32), MIN_S)
    xq = jnp.clip(x.astype(jnp.float32) * (1.0 / s), thd_neg, thd_pos)
    return (jnp.round(xq) * s).astype(x.dtype)


if __name__ == "__main__":
    # 4-bit signed activation quantizer: thd_neg=-8, thd_pos=7
    bit = 4
    thd_neg = -2 ** (bit - 1)
    thd_pos = 2 ** (bit - 1) - 1
    s_init = 2

    key = jax.random.PRNGKey(0)
    x = jax.random.normal(key, (2, 4, 16, 16), dtype=jnp.float32)  # NCHW

    # Deterministic scale init (LSQ 'origin' init mode), computed in plain JAX.
    s = jnp.abs(x).mean() * s_init / math.sqrt(thd_pos)

    out = lsq_act_quantize(x, s, thd_neg=thd_neg, thd_pos=thd_pos)
    out = jax.block_until_ready(out)

    ref = lsq_act_quantize_ref(x, s, thd_neg=thd_neg, thd_pos=thd_pos)
    assert out.shape == x.shape and out.dtype == x.dtype
    assert jnp.allclose(out, ref, atol=1e-6, rtol=1e-6), "mismatch vs reference"

    # TODO(synk): add_noise branch (noise_scale != 0) uses torch.randn_like;
    # not exercised here since default noise_scale=0. int_flag / grad_scale /
    # round_pass STE behaviors only affect training backward, not this forward.
    print("KERNEL_OK")
</pallas_src>

<mosaic_0001>
module attributes {stable_mosaic.version = 11 : i64} {
  func.func @_lsq_kernel(%arg0: i32, %arg1: memref<1xf32, #tpu.memory_space<smem>>, %arg2: memref<4x512xf32, #tpu.memory_space<vmem>>, %arg3: memref<4x512xf32, #tpu.memory_space<vmem>>) attributes {dimension_semantics = [#tpu.dimension_semantics<parallel>], iteration_bounds = array<i64: 1>, scalar_prefetch = 0 : i64, scratch_operands = 0 : i64, tpu.core_type = #tpu.core_type<tc>, window_params = [{transform_indices = @transform_0, window_bounds = array<i64: 1>}, {transform_indices = @transform_1, window_bounds = array<i64: 4, 512>}, {transform_indices = @transform_2, window_bounds = array<i64: 4, 512>}]} {
    %c0 = arith.constant 0 : index
    %0 = memref.load %arg1[%c0] : memref<1xf32, #tpu.memory_space<smem>>
    %cst = arith.constant 1.000000e-07 : f32
    %1 = arith.maximumf %0, %cst : f32
    %cst_0 = arith.constant 1.000000e+00 : f32
    %2 = arith.divf %cst_0, %1 : f32
    %c0_1 = arith.constant 0 : index
    %c0_2 = arith.constant 0 : index
    %3 = vector.load %arg2[%c0_1, %c0_2] : memref<4x512xf32, #tpu.memory_space<vmem>>, vector<4x512xf32>
    %4 = vector.broadcast %2 : f32 to vector<4x512xf32>
    %5 = arith.mulf %3, %4 : vector<4x512xf32>
    %cst_3 = arith.constant -8.000000e+00 : f32
    %cst_4 = arith.constant 7.000000e+00 : f32
    %6 = vector.broadcast %cst_3 : f32 to vector<4x512xf32>
    %7 = arith.maximumf %6, %5 : vector<4x512xf32>
    %8 = vector.broadcast %cst_4 : f32 to vector<4x512xf32>
    %9 = arith.minimumf %8, %7 : vector<4x512xf32>
    %10 = math.roundeven %9 : vector<4x512xf32>
    %11 = vector.broadcast %1 : f32 to vector<4x512xf32>
    %12 = arith.mulf %10, %11 : vector<4x512xf32>
    %c0_5 = arith.constant 0 : index
    %c0_6 = arith.constant 0 : index
    %13 = vector.load %arg3[%c0_5, %c0_6] : memref<4x512xf32, #tpu.memory_space<vmem>>, vector<4x512xf32>
    tpu.vector_store %arg3[%c0_5, %c0_6], %12 {strides = array<i32>} : memref<4x512xf32, #tpu.memory_space<vmem>>, vector<4x512xf32>,
    return
  }
  func.func @transform_0(%arg0: i32) -> i32 {
    %c0_i32 = arith.constant 0 : i32
    %c0_i32_0 = arith.constant 0 : i32
    return %c0_i32 : i32
  }
  func.func @transform_1(%arg0: i32) -> (i32, i32) {
    %c0_i32 = arith.constant 0 : i32
    %c0_i32_0 = arith.constant 0 : i32
    return %arg0, %c0_i32 : i32, i32
  }
  func.func @transform_2(%arg0: i32) -> (i32, i32) {
    %c0_i32 = arith.constant 0 : i32
    %c0_i32_0 = arith.constant 0 : i32
    return %arg0, %c0_i32 : i32, i32
  }
}

</mosaic_0001>

<llo_original>
// kernel: tpu_custom_call.1
$region0: #{tpu_custom_call.1}
  #allocation0 [shape = 'u32[]', space=smem, size = 0x4, offset = 0x4, fixed_abs, tag = 'smem constant byte address 0x4 - core index']
  #allocation1 [shape = 'u32[144,128]{1,0:T(1,128)}', space=vmem, size = 0x12000, scoped, tag = 'internal scratch']
  #allocation2 [shape = 'f32[1]{0:T(128)S(6)}', space=smem, size = 0x200, scoped, tag = 'scoped memory for tpu_custom_call.1']
  %s0 = inlined_call_operand.<no memory space> [shape: f32[1], index: 0, kind: input, shape index: {}]
  %s1 = inlined_call_operand.hbm [shape: f32[4,512], index: 1, kind: input, shape index: {}]
  %s2 = inlined_call_operand.hbm [shape: f32[4,512], index: 2, kind: output, shape index: {}]
  %s3 = sld [smem:[#allocation0]]
  $region22: #{tpu_custom_call.1} parent=0
    _
  %s5 = ssub.s32 1, %s3
  %s6 = scalar_select 0, %s5, %s3
  %7 = sst [smem:[#allocation2]] %s0
  $region1: #{tpu_custom_call.1} parent=0
    #allocation3 [shape = 'u8[8192]{0}', space=vmem, size = 0x2000, scoped, tag = 'input window, operand 1, single buffered']
    #allocation4 [shape = 's32[1]{0}', space=sflag, size = 0x4, scoped, tag = 'scoped memory for tpu_custom_call.1']
    #allocation5 [shape = 's32[1]{0}', space=sflag, size = 0x4, scoped, tag = 'scoped memory for tpu_custom_call.1']
    #allocation6 [shape = 'u8[8192]{0}', space=vmem, size = 0x2000, scoped, tag = 'output window, operand 0, single buffered']
    %8 = vsyncpa [#allocation4], 0
    %9 = vsyncpa [#allocation5], 0
    // Predicated region
    $region2: #{tpu_custom_call.1} parent=1 // pred_check
      _
    $region3: #{tpu_custom_call.1} parent=1 // pred_check_branch
      %11 = sbr.rel (0) target = $region5
    $region4: #{tpu_custom_call.1} parent=1 // pred_region
      _
    $region5: #{tpu_custom_call.1} parent=1 // pred_fallthru
      _
    // Predicated region
    $region6: #{tpu_custom_call.1} parent=1 // pred_check
      _
    $region7: #{tpu_custom_call.1} parent=1 // pred_check_branch
      %13 = sbr.rel (0) target = $region9
    $region8: #{tpu_custom_call.1} parent=1 // pred_region
      %s15 = ssub.s32 256, 256
      %16 = vsyncadd [#allocation4], %s15
      %s18 = sshll.u32 [#allocation3], 4
      %s19 = int_to_ptr.vmem [resolvable:$true] %s18
      %21 = dma.hbm_to_vmem [thread:$0]  %s1, 256, %s19, [#allocation4]
    $region9: #{tpu_custom_call.1} parent=1 // pred_fallthru
      _
    // Predicated region
    $region10: #{tpu_custom_call.1} parent=1 // pred_check
      _
    $region11: #{tpu_custom_call.1} parent=1 // pred_check_branch
      %23 = sbr.rel (0) target = $region13
    $region12: #{tpu_custom_call.1} parent=1 // pred_region
      %24 = dma.done [#allocation4], 256
    $region13: #{tpu_custom_call.1} parent=1 // pred_fallthru
      _
    %s25 = sld [smem:[#allocation2]]
    %s26 = smax.f32 %s25, 1e-07
    %v27 = vstv %s26
    %v28 = vrcp.pop %v27
    %s29 = vtos %v28
    %v30 = vld [vmem:[#allocation3] sm:$0xff]
    %v31 = vld [vmem:[#allocation3 + $0x8] sm:$0xff]
    %v32 = vstv %s29
    %v33 = vmul.f32 %v30, %v32
    %v34 = vmul.f32 %v31, %v32
    %v35 = vmax.f32 %v33, -8.0
    %v36 = vmax.f32 %v34, -8.0
    %v37 = vmin.f32 %v35, 7.0
    %v38 = vmin.f32 %v36, 7.0
    %v39 = vround.ne.pseudo %v37
    %v40 = vround.ne.pseudo %v38
    %v41 = vstv %s26
    %v42 = vmul.f32 %v39, %v41
    %v43 = vmul.f32 %v40, %v41
    %44 = vst [vmem:[#allocation6] sm:$0xff] %v42
    %45 = vst [vmem:[#allocation6 + $0x8] sm:$0xff] %v43
    // Predicated region
    $region14: #{tpu_custom_call.1} parent=1 // pred_check
      _
    $region15: #{tpu_custom_call.1} parent=1 // pred_check_branch
      %47 = sbr.rel (0) target = $region17
    $region16: #{tpu_custom_call.1} parent=1 // pred_region
      %s49 = ssub.s32 256, 256
      %50 = vsyncadd [#allocation5], %s49
      %s52 = sshll.u32 [#allocation6], 4
      %s53 = int_to_ptr.vmem [resolvable:$true] %s52
      %55 = dma.vmem_to_hbm [thread:$0]  %s53, 256, %s2, [#allocation5]
    $region17: #{tpu_custom_call.1} parent=1 // pred_fallthru
      _
    // Predicated region
    $region18: #{tpu_custom_call.1} parent=1 // pred_check
      _
    $region19: #{tpu_custom_call.1} parent=1 // pred_check_branch
      %57 = sbr.rel (0) target = $region21
    $region20: #{tpu_custom_call.1} parent=1 // pred_region
      %58 = dma.done [#allocation5], 256
    $region21: #{tpu_custom_call.1} parent=1 // pred_fallthru
      _
    %59 = vsyncpa [#allocation4], 1
    %60 = vsyncpa [#allocation5], 1

</llo_original>
